<compile_context>
chip_gen: v5e
topology: v5e:2x2
jax: 0.10.0
libtpu: 0.0.40
codegen_flags: <defaults>
</compile_context>

<pallas_src>
import functools
from math import sqrt

import jax
import jax.numpy as jnp
import numpy as np
from jax.experimental import pallas as pl
from jax.experimental.pallas import tpu as pltpu


def _cascade_kernel(levels_ref, q_ref, k_ref, v_ref, o_ref,
                    prev_ref, comb_ref, cq_ref, ck_ref, cv_ref,
                    *, max_level, scale, h_block, head_dim):
    # levels_ref        : (L, 1) int32 VMEM (shared across the grid)
    # q/k/v/o_ref       : (L, h_block*E) lane-dense slabs (one batch, h_block heads)
    # prev/comb_ref     : (L, h_block*E) float32 VMEM scratch
    # cq/ck/cv_ref      : (L, h_block*E) bfloat16 VMEM scratch (MXU operand slabs)
    E = head_dim
    lv = levels_ref[...]                                     # (L, 1) int32

    for li in range(max_level):                              # small static unroll
        m = jnp.where(jnp.logical_or(lv == li + 1, lv == -1), 1.0, 0.0)  # (L, 1) f32

        # Slab-wide mask / prev-add / scale / bf16 cast: full lane utilization,
        # head-independent for level 1 (hoisted out of the head loop).
        q = q_ref[...].astype(jnp.float32)
        k = k_ref[...].astype(jnp.float32)
        v = v_ref[...].astype(jnp.float32)
        if li == 0:
            cq = q * (m * scale)                             # scale folded into cq
            ck = k * m
            cv = v * m
        else:
            prev = prev_ref[...]
            cq = (q * m + prev) * scale
            ck = k * m + prev
            cv = v * m + prev
        cq_ref[...] = cq.astype(jnp.bfloat16)
        ck_ref[...] = ck.astype(jnp.bfloat16)
        cv_ref[...] = cv.astype(jnp.bfloat16)

        outs = []
        for h in range(h_block):                             # bounded unroll (<= 8)
            lo = h * E                                       # static lane offset
            cq_h = cq_ref[:, lo:lo + E]                      # (L, E) bf16
            ck_h = ck_ref[:, lo:lo + E]
            cv_h = cv_ref[:, lo:lo + E]

            # scores[l, s] = sum_e cq[l, e] * ck[s, e]   (no transpose materialized)
            scores = jax.lax.dot_general(
                cq_h, ck_h,
                dimension_numbers=(((1,), (1,)), ((), ())),
                preferred_element_type=jnp.float32)          # (L, L) f32

            smax = jnp.max(scores, axis=-1, keepdims=True)
            p = jnp.exp(scores - smax)
            inv = pl.reciprocal(jnp.sum(p, axis=-1, keepdims=True), approx=True)
            # NOTE: attention dropout is identity here (inference / eval mode).

            out_h = jnp.dot(p.astype(jnp.bfloat16), cv_h,
                            preferred_element_type=jnp.float32)   # (L, E) f32
            # softmax normalization and level mask fused into one (L, E) multiply.
            outs.append(out_h * (inv * m))

        packed = outs[0] if h_block == 1 else jnp.concatenate(outs, axis=1)
        if li == 0:
            comb_ref[...] = packed
        else:
            comb_ref[...] += packed
        if li + 1 < max_level:                               # prev unused after last level
            prev_ref[...] = packed

    o_ref[...] = comb_ref[...].astype(o_ref.dtype)           # lane-dense slab store


def _vmem_capacity_bytes():
    """Generation-aware VMEM capacity (falls back to v7x's 64 MiB per-TC)."""
    try:
        info = pltpu.get_tpu_info()
        cap = getattr(info, "vmem_capacity_bytes", None)
        if cap:
            return int(cap)
    except Exception:
        pass
    return 64 * 2**20


def cascading_hierarchical_attention(queries, keys, values, levels=None,
                                     max_level=None, scale=None, h_block=None):
    """queries/keys/values: (B, L, H, E) in the module's BLHE convention.
    levels: host-side int array of shape (L,), values in {-1, 1, 2, ...}."""
    B, L, H, E = queries.shape
    if levels is None:
        levels = np.ones(L, dtype=np.int32)
    levels = np.asarray(levels).astype(np.int32).reshape(L)
    if max_level is None:
        max_level = int(levels.max())
    if scale is None:          # (explicit scale=0.0 is respected, unlike `or`)
        scale = 1.0 / sqrt(E)
    if max_level < 1:          # empty cascade -> all-zero output (matches torch loop)
        return jnp.zeros_like(queries), None

    itemsize = jnp.dtype(queries.dtype).itemsize
    vmem_cap = _vmem_capacity_bytes()

    def _rup(x, m):
        return ((x + m - 1) // m) * m

    Lp = _rup(L, 8)

    def _vmem_est(hb):
        row = _rup(hb * E, 128)                  # lane-padded slab width (elements)
        tile = Lp * row * itemsize               # one q/k/v/o block
        lsq = Lp * _rup(L, 128)                  # padded (L, L) element count
        return (4 * 2 * tile                     # q/k/v/o blocks, double-buffered
                + 2 * Lp * row * 4               # prev / combined f32 scratch
                + 3 * Lp * row * 2               # cq/ck/cv bf16 scratch slabs
                + 10 * lsq                       # scores f32 + p f32 + p bf16 live set
                + 2 * Lp * 128 * 4)              # levels tile (lane-padded), dbl-buffered

    if h_block is None:
        divisors = [d for d in range(1, H + 1) if H % d == 0]
        # (8,128) layout rule: last block dim must be a multiple of 128 or the full dim.
        valid = [d for d in divisors if (d * E) % 128 == 0 or d == H] or [H]
        if B == 1:
            half = [d for d in valid if d <= H // 2]   # >= 2 grid points for v7x's 2 TCs
            if half:
                valid = half
        budget = max(vmem_cap // 4, 8 * 2**20)         # ~0.25x capacity threshold
        pool = [d for d in valid if _vmem_est(d) <= budget] or [min(valid)]
        small = [d for d in pool if d <= 8]            # bound the static unroll
        pool = small or [min(pool)]
        chunky = [d for d in pool if d * E * itemsize >= 1024]   # >= 1 KiB DMA rows
        h_block = max(chunky) if chunky else max(pool)
    assert H % h_block == 0

    est = _vmem_est(h_block)
    vmem_limit = int(min(int(0.75 * vmem_cap), max(32 * 2**20, 2 * est)))

    levels_arr = jnp.asarray(levels.reshape(L, 1))
    q2 = queries.reshape(B, L, H * E)            # free, contiguous reshape
    k2 = keys.reshape(B, L, H * E)
    v2 = values.reshape(B, L, H * E)

    kernel = functools.partial(_cascade_kernel, max_level=max_level,
                               scale=float(scale), h_block=h_block, head_dim=E)

    slab = h_block * E
    qkv_spec = pl.BlockSpec((pl.Squeezed(), L, slab), lambda b, hb: (b, 0, hb))

    out = pl.pallas_call(
        kernel,
        out_shape=jax.ShapeDtypeStruct((B, L, H * E), queries.dtype),
        grid=(B, H // h_block),
        in_specs=[
            pl.BlockSpec((L, 1), lambda b, hb: (0, 0)),    # levels (shared)
            qkv_spec,                                      # queries (lane-dense slab)
            qkv_spec,                                      # keys
            qkv_spec,                                      # values
        ],
        out_specs=pl.BlockSpec((pl.Squeezed(), L, slab), lambda b, hb: (b, 0, hb)),
        scratch_shapes=[pltpu.VMEM((L, slab), jnp.float32),    # previous_output
                        pltpu.VMEM((L, slab), jnp.float32),    # combined_output
                        pltpu.VMEM((L, slab), jnp.bfloat16),   # cq slab (MXU operand)
                        pltpu.VMEM((L, slab), jnp.bfloat16),   # ck slab
                        pltpu.VMEM((L, slab), jnp.bfloat16)],  # cv slab
        compiler_params=pltpu.CompilerParams(
            dimension_semantics=("parallel", "parallel"),
            vmem_limit_bytes=vmem_limit),
    )(levels_arr, q2, k2, v2)

    return out.reshape(B, L, H, E), None


def _reference(queries, keys, values, levels, max_level, scale=None):
    """Pure-JAX (f32) reference matching the PyTorch forward (dropout = identity)."""
    B, L, H, E = queries.shape
    scale = scale if scale is not None else 1.0 / sqrt(E)
    levels = np.asarray(levels)
    prev = jnp.zeros_like(queries)
    comb = jnp.zeros_like(queries)
    for li in range(1, max_level + 1):
        m = jnp.asarray(
            np.logical_or(levels == li, levels == -1).astype(np.float32)
        )[None, :, None, None]
        cq, ck, cv = queries * m, keys * m, values * m
        if li > 1:
            cq, ck, cv = prev + cq, prev + ck, prev + cv
        scores = jnp.einsum('blhe,bshe->bhls', cq, ck)
        A = jax.nn.softmax(scale * scores, axis=-1)
        V = jnp.einsum('bhls,bshd->blhd', A, cv)
        comb = comb + V * m
        prev = V * m
    return comb


if __name__ == "__main__":
    B, L, H, E = 2, 8, 4, 32
    max_level = 2
    levels = np.array([1, 1, 2, -1, 2, 1, 2, 1], dtype=np.int32)

    key = jax.random.PRNGKey(0)
    kq, kk, kv = jax.random.split(key, 3)
    queries = jax.random.normal(kq, (B, L, H, E), dtype=jnp.float32)
    keys = jax.random.normal(kk, (B, L, H, E), dtype=jnp.float32)
    values = jax.random.normal(kv, (B, L, H, E), dtype=jnp.float32)

    out, attn = cascading_hierarchical_attention(queries, keys, values, levels,
                                                 max_level=max_level)
    out = jax.block_until_ready(out)
    assert attn is None and out.shape == (B, L, H, E)

    ref = jax.block_until_ready(_reference(queries, keys, values, levels, max_level))
    # bf16 MXU operands (f32 accumulation, approx reciprocal) -> relaxed tolerance.
    np.testing.assert_allclose(np.asarray(out), np.asarray(ref), rtol=2e-2, atol=2e-2)

    print("KERNEL_OK")
</pallas_src>

<mosaic_0001>
module attributes {stable_mosaic.version = 11 : i64} {
  func.func @_cascade_kernel(%arg0: i32, %arg1: i32, %arg2: memref<8x1xi32, #tpu.memory_space<vmem>>, %arg3: memref<1x8x128xf32, #tpu.memory_space<vmem>>, %arg4: memref<1x8x128xf32, #tpu.memory_space<vmem>>, %arg5: memref<1x8x128xf32, #tpu.memory_space<vmem>>, %arg6: memref<1x8x128xf32, #tpu.memory_space<vmem>>, %arg7: memref<8x128xf32, #tpu.memory_space<vmem>>, %arg8: memref<8x128xf32, #tpu.memory_space<vmem>>, %arg9: memref<8x128xbf16, #tpu.memory_space<vmem>>, %arg10: memref<8x128xbf16, #tpu.memory_space<vmem>>, %arg11: memref<8x128xbf16, #tpu.memory_space<vmem>>) attributes {dimension_semantics = [#tpu.dimension_semantics<parallel>, #tpu.dimension_semantics<parallel>], iteration_bounds = array<i64: 2, 1>, scalar_prefetch = 0 : i64, scratch_operands = 5 : i64, tpu.core_type = #tpu.core_type<tc>, window_params = [{pipeline_mode = #tpu.pipeline_mode<synchronous>, transform_indices = @transform_0, window_bounds = array<i64: 8, 1>}, {transform_indices = @transform_1, window_bounds = array<i64: 1, 8, 128>}, {transform_indices = @transform_2, window_bounds = array<i64: 1, 8, 128>}, {transform_indices = @transform_3, window_bounds = array<i64: 1, 8, 128>}, {transform_indices = @transform_4, window_bounds = array<i64: 1, 8, 128>}]} {
    %c0 = arith.constant 0 : index
    %c0_0 = arith.constant 0 : index
    %0 = vector.load %arg2[%c0, %c0_0] : memref<8x1xi32, #tpu.memory_space<vmem>>, vector<8x1xi32>
    %c1_i32 = arith.constant 1 : i32
    %1 = vector.broadcast %c1_i32 : i32 to vector<8x1xi32>
    %2 = arith.cmpi eq, %0, %1 : vector<8x1xi32>
    %c-1_i32 = arith.constant -1 : i32
    %3 = vector.broadcast %c-1_i32 : i32 to vector<8x1xi32>
    %4 = arith.cmpi eq, %0, %3 : vector<8x1xi32>
    %5 = arith.ori %2, %4 : vector<8x1xi1>
    %cst = arith.constant 1.000000e+00 : f32
    %cst_1 = arith.constant 0.000000e+00 : f32
    %6 = vector.broadcast %cst : f32 to vector<8x1xf32>
    %7 = vector.broadcast %cst_1 : f32 to vector<8x1xf32>
    %8 = arith.select %5, %6, %7 : vector<8x1xi1>, vector<8x1xf32>
    %c0_2 = arith.constant 0 : index
    %c0_3 = arith.constant 0 : index
    %c0_4 = arith.constant 0 : index
    %9 = vector.load %arg3[%c0_2, %c0_3, %c0_4] : memref<1x8x128xf32, #tpu.memory_space<vmem>>, vector<1x8x128xf32>
    %10 = vector.shape_cast %9 : vector<1x8x128xf32> to vector<8x128xf32>
    %c0_5 = arith.constant 0 : index
    %c0_6 = arith.constant 0 : index
    %c0_7 = arith.constant 0 : index
    %11 = vector.load %arg4[%c0_5, %c0_6, %c0_7] : memref<1x8x128xf32, #tpu.memory_space<vmem>>, vector<1x8x128xf32>
    %12 = vector.shape_cast %11 : vector<1x8x128xf32> to vector<8x128xf32>
    %c0_8 = arith.constant 0 : index
    %c0_9 = arith.constant 0 : index
    %c0_10 = arith.constant 0 : index
    %13 = vector.load %arg5[%c0_8, %c0_9, %c0_10] : memref<1x8x128xf32, #tpu.memory_space<vmem>>, vector<1x8x128xf32>
    %14 = vector.shape_cast %13 : vector<1x8x128xf32> to vector<8x128xf32>
    %cst_11 = arith.constant 0.176776692 : f32
    %15 = vector.broadcast %cst_11 : f32 to vector<8x1xf32>
    %16 = arith.mulf %8, %15 : vector<8x1xf32>
    %17 = vector.broadcast %16 : vector<8x1xf32> to vector<8x128xf32>
    %18 = arith.mulf %10, %17 : vector<8x128xf32>
    %19 = vector.broadcast %8 : vector<8x1xf32> to vector<8x128xf32>
    %20 = arith.mulf %12, %19 : vector<8x128xf32>
    %21 = vector.broadcast %8 : vector<8x1xf32> to vector<8x128xf32>
    %22 = arith.mulf %14, %21 : vector<8x128xf32>
    %23 = arith.truncf %18 : vector<8x128xf32> to vector<8x128xbf16>
    %c0_12 = arith.constant 0 : index
    %c0_13 = arith.constant 0 : index
    %24 = vector.load %arg9[%c0_12, %c0_13] : memref<8x128xbf16, #tpu.memory_space<vmem>>, vector<8x128xbf16>
    tpu.vector_store %arg9[%c0_12, %c0_13], %23 {strides = array<i32>} : memref<8x128xbf16, #tpu.memory_space<vmem>>, vector<8x128xbf16>,
    %25 = arith.truncf %20 : vector<8x128xf32> to vector<8x128xbf16>
    %c0_14 = arith.constant 0 : index
    %c0_15 = arith.constant 0 : index
    %26 = vector.load %arg10[%c0_14, %c0_15] : memref<8x128xbf16, #tpu.memory_space<vmem>>, vector<8x128xbf16>
    tpu.vector_store %arg10[%c0_14, %c0_15], %25 {strides = array<i32>} : memref<8x128xbf16, #tpu.memory_space<vmem>>, vector<8x128xbf16>,
    %27 = arith.truncf %22 : vector<8x128xf32> to vector<8x128xbf16>
    %c0_16 = arith.constant 0 : index
    %c0_17 = arith.constant 0 : index
    %28 = vector.load %arg11[%c0_16, %c0_17] : memref<8x128xbf16, #tpu.memory_space<vmem>>, vector<8x128xbf16>
    tpu.vector_store %arg11[%c0_16, %c0_17], %27 {strides = array<i32>} : memref<8x128xbf16, #tpu.memory_space<vmem>>, vector<8x128xbf16>,
    %c0_18 = arith.constant 0 : index
    %c0_19 = arith.constant 0 : index
    %29 = vector.load %arg9[%c0_18, %c0_19] : memref<8x128xbf16, #tpu.memory_space<vmem>>, vector<8x32xbf16>
    %c0_20 = arith.constant 0 : index
    %c0_21 = arith.constant 0 : index
    %30 = vector.load %arg10[%c0_20, %c0_21] : memref<8x128xbf16, #tpu.memory_space<vmem>>, vector<8x32xbf16>
    %c0_22 = arith.constant 0 : index
    %c0_23 = arith.constant 0 : index
    %31 = vector.load %arg11[%c0_22, %c0_23] : memref<8x128xbf16, #tpu.memory_space<vmem>>, vector<8x32xbf16>
    %cst_24 = arith.constant dense<0.000000e+00> : vector<8x8xf32>
    %32 = tpu.matmul %29, %30, %cst_24 {dimension_numbers = #tpu.dot_dimension_numbers<[1], [1], [0], [0], [0, 0, 1, 0], [], []>} : vector<8x32xbf16>, vector<8x32xbf16>, vector<8x8xf32> -> vector<8x8xf32>
    %cst_25 = arith.constant dense<0xFF800000> : vector<8xf32>
    %33 = vector.multi_reduction <maximumf>, %32, %cst_25 [1] : vector<8x8xf32> to vector<8xf32>
    %34 = vector.shape_cast %33 : vector<8xf32> to vector<8x1xf32>
    %35 = vector.broadcast %34 : vector<8x1xf32> to vector<8x8xf32>
    %36 = arith.subf %32, %35 : vector<8x8xf32>
    %37 = math.exp %36 : vector<8x8xf32>
    %cst_26 = arith.constant dense<0.000000e+00> : vector<8xf32>
    %38 = vector.multi_reduction <add>, %37, %cst_26 [1] : vector<8x8xf32> to vector<8xf32>
    %39 = vector.shape_cast %38 : vector<8xf32> to vector<8x1xf32>
    %40 = tpu.reciprocal %39 {approx = true} : vector<8x1xf32> -> vector<8x1xf32>
    %41 = arith.truncf %37 : vector<8x8xf32> to vector<8x8xbf16>
    %cst_27 = arith.constant dense<0.000000e+00> : vector<8x32xf32>
    %42 = tpu.matmul %41, %31, %cst_27 {dimension_numbers = #tpu.dot_dimension_numbers<[1], [0], [0], [1], [0, 0, 1, 1], [], []>} : vector<8x8xbf16>, vector<8x32xbf16>, vector<8x32xf32> -> vector<8x32xf32>
    %43 = arith.mulf %40, %8 : vector<8x1xf32>
    %44 = vector.broadcast %43 : vector<8x1xf32> to vector<8x32xf32>
    %45 = arith.mulf %42, %44 : vector<8x32xf32>
    %c0_28 = arith.constant 0 : index
    %c32 = arith.constant 32 : index
    %46 = vector.load %arg9[%c0_28, %c32] : memref<8x128xbf16, #tpu.memory_space<vmem>>, vector<8x32xbf16>
    %c0_29 = arith.constant 0 : index
    %c32_30 = arith.constant 32 : index
    %47 = vector.load %arg10[%c0_29, %c32_30] : memref<8x128xbf16, #tpu.memory_space<vmem>>, vector<8x32xbf16>
    %c0_31 = arith.constant 0 : index
    %c32_32 = arith.constant 32 : index
    %48 = vector.load %arg11[%c0_31, %c32_32] : memref<8x128xbf16, #tpu.memory_space<vmem>>, vector<8x32xbf16>
    %cst_33 = arith.constant dense<0.000000e+00> : vector<8x8xf32>
    %49 = tpu.matmul %46, %47, %cst_33 {dimension_numbers = #tpu.dot_dimension_numbers<[1], [1], [0], [0], [0, 0, 1, 0], [], []>} : vector<8x32xbf16>, vector<8x32xbf16>, vector<8x8xf32> -> vector<8x8xf32>
    %cst_34 = arith.constant dense<0xFF800000> : vector<8xf32>
    %50 = vector.multi_reduction <maximumf>, %49, %cst_34 [1] : vector<8x8xf32> to vector<8xf32>
    %51 = vector.shape_cast %50 : vector<8xf32> to vector<8x1xf32>
    %52 = vector.broadcast %51 : vector<8x1xf32> to vector<8x8xf32>
    %53 = arith.subf %49, %52 : vector<8x8xf32>
    %54 = math.exp %53 : vector<8x8xf32>
    %cst_35 = arith.constant dense<0.000000e+00> : vector<8xf32>
    %55 = vector.multi_reduction <add>, %54, %cst_35 [1] : vector<8x8xf32> to vector<8xf32>
    %56 = vector.shape_cast %55 : vector<8xf32> to vector<8x1xf32>
    %57 = tpu.reciprocal %56 {approx = true} : vector<8x1xf32> -> vector<8x1xf32>
    %58 = arith.truncf %54 : vector<8x8xf32> to vector<8x8xbf16>
    %cst_36 = arith.constant dense<0.000000e+00> : vector<8x32xf32>
    %59 = tpu.matmul %58, %48, %cst_36 {dimension_numbers = #tpu.dot_dimension_numbers<[1], [0], [0], [1], [0, 0, 1, 1], [], []>} : vector<8x8xbf16>, vector<8x32xbf16>, vector<8x32xf32> -> vector<8x32xf32>
    %60 = arith.mulf %57, %8 : vector<8x1xf32>
    %61 = vector.broadcast %60 : vector<8x1xf32> to vector<8x32xf32>
    %62 = arith.mulf %59, %61 : vector<8x32xf32>
    %c0_37 = arith.constant 0 : index
    %c64 = arith.constant 64 : index
    %63 = vector.load %arg9[%c0_37, %c64] : memref<8x128xbf16, #tpu.memory_space<vmem>>, vector<8x32xbf16>
    %c0_38 = arith.constant 0 : index
    %c64_39 = arith.constant 64 : index
    %64 = vector.load %arg10[%c0_38, %c64_39] : memref<8x128xbf16, #tpu.memory_space<vmem>>, vector<8x32xbf16>
    %c0_40 = arith.constant 0 : index
    %c64_41 = arith.constant 64 : index
    %65 = vector.load %arg11[%c0_40, %c64_41] : memref<8x128xbf16, #tpu.memory_space<vmem>>, vector<8x32xbf16>
    %cst_42 = arith.constant dense<0.000000e+00> : vector<8x8xf32>
    %66 = tpu.matmul %63, %64, %cst_42 {dimension_numbers = #tpu.dot_dimension_numbers<[1], [1], [0], [0], [0, 0, 1, 0], [], []>} : vector<8x32xbf16>, vector<8x32xbf16>, vector<8x8xf32> -> vector<8x8xf32>
    %cst_43 = arith.constant dense<0xFF800000> : vector<8xf32>
    %67 = vector.multi_reduction <maximumf>, %66, %cst_43 [1] : vector<8x8xf32> to vector<8xf32>
    %68 = vector.shape_cast %67 : vector<8xf32> to vector<8x1xf32>
    %69 = vector.broadcast %68 : vector<8x1xf32> to vector<8x8xf32>
    %70 = arith.subf %66, %69 : vector<8x8xf32>
    %71 = math.exp %70 : vector<8x8xf32>
    %cst_44 = arith.constant dense<0.000000e+00> : vector<8xf32>
    %72 = vector.multi_reduction <add>, %71, %cst_44 [1] : vector<8x8xf32> to vector<8xf32>
    %73 = vector.shape_cast %72 : vector<8xf32> to vector<8x1xf32>
    %74 = tpu.reciprocal %73 {approx = true} : vector<8x1xf32> -> vector<8x1xf32>
    %75 = arith.truncf %71 : vector<8x8xf32> to vector<8x8xbf16>
    %cst_45 = arith.constant dense<0.000000e+00> : vector<8x32xf32>
    %76 = tpu.matmul %75, %65, %cst_45 {dimension_numbers = #tpu.dot_dimension_numbers<[1], [0], [0], [1], [0, 0, 1, 1], [], []>} : vector<8x8xbf16>, vector<8x32xbf16>, vector<8x32xf32> -> vector<8x32xf32>
    %77 = arith.mulf %74, %8 : vector<8x1xf32>
    %78 = vector.broadcast %77 : vector<8x1xf32> to vector<8x32xf32>
    %79 = arith.mulf %76, %78 : vector<8x32xf32>
    %c0_46 = arith.constant 0 : index
    %c96 = arith.constant 96 : index
    %80 = vector.load %arg9[%c0_46, %c96] : memref<8x128xbf16, #tpu.memory_space<vmem>>, vector<8x32xbf16>
    %c0_47 = arith.constant 0 : index
    %c96_48 = arith.constant 96 : index
    %81 = vector.load %arg10[%c0_47, %c96_48] : memref<8x128xbf16, #tpu.memory_space<vmem>>, vector<8x32xbf16>
    %c0_49 = arith.constant 0 : index
    %c96_50 = arith.constant 96 : index
    %82 = vector.load %arg11[%c0_49, %c96_50] : memref<8x128xbf16, #tpu.memory_space<vmem>>, vector<8x32xbf16>
    %cst_51 = arith.constant dense<0.000000e+00> : vector<8x8xf32>
    %83 = tpu.matmul %80, %81, %cst_51 {dimension_numbers = #tpu.dot_dimension_numbers<[1], [1], [0], [0], [0, 0, 1, 0], [], []>} : vector<8x32xbf16>, vector<8x32xbf16>, vector<8x8xf32> -> vector<8x8xf32>
    %cst_52 = arith.constant dense<0xFF800000> : vector<8xf32>
    %84 = vector.multi_reduction <maximumf>, %83, %cst_52 [1] : vector<8x8xf32> to vector<8xf32>
    %85 = vector.shape_cast %84 : vector<8xf32> to vector<8x1xf32>
    %86 = vector.broadcast %85 : vector<8x1xf32> to vector<8x8xf32>
    %87 = arith.subf %83, %86 : vector<8x8xf32>
    %88 = math.exp %87 : vector<8x8xf32>
    %cst_53 = arith.constant dense<0.000000e+00> : vector<8xf32>
    %89 = vector.multi_reduction <add>, %88, %cst_53 [1] : vector<8x8xf32> to vector<8xf32>
    %90 = vector.shape_cast %89 : vector<8xf32> to vector<8x1xf32>
    %91 = tpu.reciprocal %90 {approx = true} : vector<8x1xf32> -> vector<8x1xf32>
    %92 = arith.truncf %88 : vector<8x8xf32> to vector<8x8xbf16>
    %cst_54 = arith.constant dense<0.000000e+00> : vector<8x32xf32>
    %93 = tpu.matmul %92, %82, %cst_54 {dimension_numbers = #tpu.dot_dimension_numbers<[1], [0], [0], [1], [0, 0, 1, 1], [], []>} : vector<8x8xbf16>, vector<8x32xbf16>, vector<8x32xf32> -> vector<8x32xf32>
    %94 = arith.mulf %91, %8 : vector<8x1xf32>
    %95 = vector.broadcast %94 : vector<8x1xf32> to vector<8x32xf32>
    %96 = arith.mulf %93, %95 : vector<8x32xf32>
    %97 = tpu.concatenate %45, %62, %79, %96 in 1 : vector<8x32xf32>, vector<8x32xf32>, vector<8x32xf32>, vector<8x32xf32> -> vector<8x128xf32>
    %c0_55 = arith.constant 0 : index
    %c0_56 = arith.constant 0 : index
    %98 = vector.load %arg8[%c0_55, %c0_56] : memref<8x128xf32, #tpu.memory_space<vmem>>, vector<8x128xf32>
    tpu.vector_store %arg8[%c0_55, %c0_56], %97 {strides = array<i32>} : memref<8x128xf32, #tpu.memory_space<vmem>>, vector<8x128xf32>,
    %c0_57 = arith.constant 0 : index
    %c0_58 = arith.constant 0 : index
    %99 = vector.load %arg7[%c0_57, %c0_58] : memref<8x128xf32, #tpu.memory_space<vmem>>, vector<8x128xf32>
    tpu.vector_store %arg7[%c0_57, %c0_58], %97 {strides = array<i32>} : memref<8x128xf32, #tpu.memory_space<vmem>>, vector<8x128xf32>,
    %c2_i32 = arith.constant 2 : i32
    %100 = vector.broadcast %c2_i32 : i32 to vector<8x1xi32>
    %101 = arith.cmpi eq, %0, %100 : vector<8x1xi32>
    %c-1_i32_59 = arith.constant -1 : i32
    %102 = vector.broadcast %c-1_i32_59 : i32 to vector<8x1xi32>
    %103 = arith.cmpi eq, %0, %102 : vector<8x1xi32>
    %104 = arith.ori %101, %103 : vector<8x1xi1>
    %cst_60 = arith.constant 1.000000e+00 : f32
    %cst_61 = arith.constant 0.000000e+00 : f32
    %105 = vector.broadcast %cst_60 : f32 to vector<8x1xf32>
    %106 = vector.broadcast %cst_61 : f32 to vector<8x1xf32>
    %107 = arith.select %104, %105, %106 : vector<8x1xi1>, vector<8x1xf32>
    %c0_62 = arith.constant 0 : index
    %c0_63 = arith.constant 0 : index
    %c0_64 = arith.constant 0 : index
    %108 = vector.load %arg3[%c0_62, %c0_63, %c0_64] : memref<1x8x128xf32, #tpu.memory_space<vmem>>, vector<1x8x128xf32>
    %109 = vector.shape_cast %108 : vector<1x8x128xf32> to vector<8x128xf32>
    %c0_65 = arith.constant 0 : index
    %c0_66 = arith.constant 0 : index
    %c0_67 = arith.constant 0 : index
    %110 = vector.load %arg4[%c0_65, %c0_66, %c0_67] : memref<1x8x128xf32, #tpu.memory_space<vmem>>, vector<1x8x128xf32>
    %111 = vector.shape_cast %110 : vector<1x8x128xf32> to vector<8x128xf32>
    %c0_68 = arith.constant 0 : index
    %c0_69 = arith.constant 0 : index
    %c0_70 = arith.constant 0 : index
    %112 = vector.load %arg5[%c0_68, %c0_69, %c0_70] : memref<1x8x128xf32, #tpu.memory_space<vmem>>, vector<1x8x128xf32>
    %113 = vector.shape_cast %112 : vector<1x8x128xf32> to vector<8x128xf32>
    %c0_71 = arith.constant 0 : index
    %c0_72 = arith.constant 0 : index
    %114 = vector.load %arg7[%c0_71, %c0_72] : memref<8x128xf32, #tpu.memory_space<vmem>>, vector<8x128xf32>
    %115 = vector.broadcast %107 : vector<8x1xf32> to vector<8x128xf32>
    %116 = arith.mulf %109, %115 : vector<8x128xf32>
    %117 = arith.addf %116, %114 : vector<8x128xf32>
    %cst_73 = arith.constant 0.176776692 : f32
    %118 = vector.broadcast %cst_73 : f32 to vector<8x128xf32>
    %119 = arith.mulf %117, %118 : vector<8x128xf32>
    %120 = vector.broadcast %107 : vector<8x1xf32> to vector<8x128xf32>
    %121 = arith.mulf %111, %120 : vector<8x128xf32>
    %122 = arith.addf %121, %114 : vector<8x128xf32>
    %123 = vector.broadcast %107 : vector<8x1xf32> to vector<8x128xf32>
    %124 = arith.mulf %113, %123 : vector<8x128xf32>
    %125 = arith.addf %124, %114 : vector<8x128xf32>
    %126 = arith.truncf %119 : vector<8x128xf32> to vector<8x128xbf16>
    %c0_74 = arith.constant 0 : index
    %c0_75 = arith.constant 0 : index
    %127 = vector.load %arg9[%c0_74, %c0_75] : memref<8x128xbf16, #tpu.memory_space<vmem>>, vector<8x128xbf16>
    tpu.vector_store %arg9[%c0_74, %c0_75], %126 {strides = array<i32>} : memref<8x128xbf16, #tpu.memory_space<vmem>>, vector<8x128xbf16>,
    %128 = arith.truncf %122 : vector<8x128xf32> to vector<8x128xbf16>
    %c0_76 = arith.constant 0 : index
    %c0_77 = arith.constant 0 : index
    %129 = vector.load %arg10[%c0_76, %c0_77] : memref<8x128xbf16, #tpu.memory_space<vmem>>, vector<8x128xbf16>
    tpu.vector_store %arg10[%c0_76, %c0_77], %128 {strides = array<i32>} : memref<8x128xbf16, #tpu.memory_space<vmem>>, vector<8x128xbf16>,
    %130 = arith.truncf %125 : vector<8x128xf32> to vector<8x128xbf16>
    %c0_78 = arith.constant 0 : index
    %c0_79 = arith.constant 0 : index
    %131 = vector.load %arg11[%c0_78, %c0_79] : memref<8x128xbf16, #tpu.memory_space<vmem>>, vector<8x128xbf16>
    tpu.vector_store %arg11[%c0_78, %c0_79], %130 {strides = array<i32>} : memref<8x128xbf16, #tpu.memory_space<vmem>>, vector<8x128xbf16>,
    %c0_80 = arith.constant 0 : index
    %c0_81 = arith.constant 0 : index
    %132 = vector.load %arg9[%c0_80, %c0_81] : memref<8x128xbf16, #tpu.memory_space<vmem>>, vector<8x32xbf16>
    %c0_82 = arith.constant 0 : index
    %c0_83 = arith.constant 0 : index
    %133 = vector.load %arg10[%c0_82, %c0_83] : memref<8x128xbf16, #tpu.memory_space<vmem>>, vector<8x32xbf16>
    %c0_84 = arith.constant 0 : index
    %c0_85 = arith.constant 0 : index
    %134 = vector.load %arg11[%c0_84, %c0_85] : memref<8x128xbf16, #tpu.memory_space<vmem>>, vector<8x32xbf16>
    %cst_86 = arith.constant dense<0.000000e+00> : vector<8x8xf32>
    %135 = tpu.matmul %132, %133, %cst_86 {dimension_numbers = #tpu.dot_dimension_numbers<[1], [1], [0], [0], [0, 0, 1, 0], [], []>} : vector<8x32xbf16>, vector<8x32xbf16>, vector<8x8xf32> -> vector<8x8xf32>
    %cst_87 = arith.constant dense<0xFF800000> : vector<8xf32>
    %136 = vector.multi_reduction <maximumf>, %135, %cst_87 [1] : vector<8x8xf32> to vector<8xf32>
    %137 = vector.shape_cast %136 : vector<8xf32> to vector<8x1xf32>
    %138 = vector.broadcast %137 : vector<8x1xf32> to vector<8x8xf32>
    %139 = arith.subf %135, %138 : vector<8x8xf32>
    %140 = math.exp %139 : vector<8x8xf32>
    %cst_88 = arith.constant dense<0.000000e+00> : vector<8xf32>
    %141 = vector.multi_reduction <add>, %140, %cst_88 [1] : vector<8x8xf32> to vector<8xf32>
    %142 = vector.shape_cast %141 : vector<8xf32> to vector<8x1xf32>
    %143 = tpu.reciprocal %142 {approx = true} : vector<8x1xf32> -> vector<8x1xf32>
    %144 = arith.truncf %140 : vector<8x8xf32> to vector<8x8xbf16>
    %cst_89 = arith.constant dense<0.000000e+00> : vector<8x32xf32>
    %145 = tpu.matmul %144, %134, %cst_89 {dimension_numbers = #tpu.dot_dimension_numbers<[1], [0], [0], [1], [0, 0, 1, 1], [], []>} : vector<8x8xbf16>, vector<8x32xbf16>, vector<8x32xf32> -> vector<8x32xf32>
    %146 = arith.mulf %143, %107 : vector<8x1xf32>
    %147 = vector.broadcast %146 : vector<8x1xf32> to vector<8x32xf32>
    %148 = arith.mulf %145, %147 : vector<8x32xf32>
    %c0_90 = arith.constant 0 : index
    %c32_91 = arith.constant 32 : index
    %149 = vector.load %arg9[%c0_90, %c32_91] : memref<8x128xbf16, #tpu.memory_space<vmem>>, vector<8x32xbf16>
    %c0_92 = arith.constant 0 : index
    %c32_93 = arith.constant 32 : index
    %150 = vector.load %arg10[%c0_92, %c32_93] : memref<8x128xbf16, #tpu.memory_space<vmem>>, vector<8x32xbf16>
    %c0_94 = arith.constant 0 : index
    %c32_95 = arith.constant 32 : index
    %151 = vector.load %arg11[%c0_94, %c32_95] : memref<8x128xbf16, #tpu.memory_space<vmem>>, vector<8x32xbf16>
    %cst_96 = arith.constant dense<0.000000e+00> : vector<8x8xf32>
    %152 = tpu.matmul %149, %150, %cst_96 {dimension_numbers = #tpu.dot_dimension_numbers<[1], [1], [0], [0], [0, 0, 1, 0], [], []>} : vector<8x32xbf16>, vector<8x32xbf16>, vector<8x8xf32> -> vector<8x8xf32>
    %cst_97 = arith.constant dense<0xFF800000> : vector<8xf32>
    %153 = vector.multi_reduction <maximumf>, %152, %cst_97 [1] : vector<8x8xf32> to vector<8xf32>
    %154 = vector.shape_cast %153 : vector<8xf32> to vector<8x1xf32>
    %155 = vector.broadcast %154 : vector<8x1xf32> to vector<8x8xf32>
    %156 = arith.subf %152, %155 : vector<8x8xf32>
    %157 = math.exp %156 : vector<8x8xf32>
    %cst_98 = arith.constant dense<0.000000e+00> : vector<8xf32>
    %158 = vector.multi_reduction <add>, %157, %cst_98 [1] : vector<8x8xf32> to vector<8xf32>
    %159 = vector.shape_cast %158 : vector<8xf32> to vector<8x1xf32>
    %160 = tpu.reciprocal %159 {approx = true} : vector<8x1xf32> -> vector<8x1xf32>
    %161 = arith.truncf %157 : vector<8x8xf32> to vector<8x8xbf16>
    %cst_99 = arith.constant dense<0.000000e+00> : vector<8x32xf32>
    %162 = tpu.matmul %161, %151, %cst_99 {dimension_numbers = #tpu.dot_dimension_numbers<[1], [0], [0], [1], [0, 0, 1, 1], [], []>} : vector<8x8xbf16>, vector<8x32xbf16>, vector<8x32xf32> -> vector<8x32xf32>
    %163 = arith.mulf %160, %107 : vector<8x1xf32>
    %164 = vector.broadcast %163 : vector<8x1xf32> to vector<8x32xf32>
    %165 = arith.mulf %162, %164 : vector<8x32xf32>
    %c0_100 = arith.constant 0 : index
    %c64_101 = arith.constant 64 : index
    %166 = vector.load %arg9[%c0_100, %c64_101] : memref<8x128xbf16, #tpu.memory_space<vmem>>, vector<8x32xbf16>
    %c0_102 = arith.constant 0 : index
    %c64_103 = arith.constant 64 : index
    %167 = vector.load %arg10[%c0_102, %c64_103] : memref<8x128xbf16, #tpu.memory_space<vmem>>, vector<8x32xbf16>
    %c0_104 = arith.constant 0 : index
    %c64_105 = arith.constant 64 : index
    %168 = vector.load %arg11[%c0_104, %c64_105] : memref<8x128xbf16, #tpu.memory_space<vmem>>, vector<8x32xbf16>
    %cst_106 = arith.constant dense<0.000000e+00> : vector<8x8xf32>
    %169 = tpu.matmul %166, %167, %cst_106 {dimension_numbers = #tpu.dot_dimension_numbers<[1], [1], [0], [0], [0, 0, 1, 0], [], []>} : vector<8x32xbf16>, vector<8x32xbf16>, vector<8x8xf32> -> vector<8x8xf32>
    %cst_107 = arith.constant dense<0xFF800000> : vector<8xf32>
    %170 = vector.multi_reduction <maximumf>, %169, %cst_107 [1] : vector<8x8xf32> to vector<8xf32>
    %171 = vector.shape_cast %170 : vector<8xf32> to vector<8x1xf32>
    %172 = vector.broadcast %171 : vector<8x1xf32> to vector<8x8xf32>
    %173 = arith.subf %169, %172 : vector<8x8xf32>
    %174 = math.exp %173 : vector<8x8xf32>
    %cst_108 = arith.constant dense<0.000000e+00> : vector<8xf32>
    %175 = vector.multi_reduction <add>, %174, %cst_108 [1] : vector<8x8xf32> to vector<8xf32>
    %176 = vector.shape_cast %175 : vector<8xf32> to vector<8x1xf32>
    %177 = tpu.reciprocal %176 {approx = true} : vector<8x1xf32> -> vector<8x1xf32>
    %178 = arith.truncf %174 : vector<8x8xf32> to vector<8x8xbf16>
    %cst_109 = arith.constant dense<0.000000e+00> : vector<8x32xf32>
    %179 = tpu.matmul %178, %168, %cst_109 {dimension_numbers = #tpu.dot_dimension_numbers<[1], [0], [0], [1], [0, 0, 1, 1], [], []>} : vector<8x8xbf16>, vector<8x32xbf16>, vector<8x32xf32> -> vector<8x32xf32>
    %180 = arith.mulf %177, %107 : vector<8x1xf32>
    %181 = vector.broadcast %180 : vector<8x1xf32> to vector<8x32xf32>
    %182 = arith.mulf %179, %181 : vector<8x32xf32>
    %c0_110 = arith.constant 0 : index
    %c96_111 = arith.constant 96 : index
    %183 = vector.load %arg9[%c0_110, %c96_111] : memref<8x128xbf16, #tpu.memory_space<vmem>>, vector<8x32xbf16>
    %c0_112 = arith.constant 0 : index
    %c96_113 = arith.constant 96 : index
    %184 = vector.load %arg10[%c0_112, %c96_113] : memref<8x128xbf16, #tpu.memory_space<vmem>>, vector<8x32xbf16>
    %c0_114 = arith.constant 0 : index
    %c96_115 = arith.constant 96 : index
    %185 = vector.load %arg11[%c0_114, %c96_115] : memref<8x128xbf16, #tpu.memory_space<vmem>>, vector<8x32xbf16>
    %cst_116 = arith.constant dense<0.000000e+00> : vector<8x8xf32>
    %186 = tpu.matmul %183, %184, %cst_116 {dimension_numbers = #tpu.dot_dimension_numbers<[1], [1], [0], [0], [0, 0, 1, 0], [], []>} : vector<8x32xbf16>, vector<8x32xbf16>, vector<8x8xf32> -> vector<8x8xf32>
    %cst_117 = arith.constant dense<0xFF800000> : vector<8xf32>
    %187 = vector.multi_reduction <maximumf>, %186, %cst_117 [1] : vector<8x8xf32> to vector<8xf32>
    %188 = vector.shape_cast %187 : vector<8xf32> to vector<8x1xf32>
    %189 = vector.broadcast %188 : vector<8x1xf32> to vector<8x8xf32>
    %190 = arith.subf %186, %189 : vector<8x8xf32>
    %191 = math.exp %190 : vector<8x8xf32>
    %cst_118 = arith.constant dense<0.000000e+00> : vector<8xf32>
    %192 = vector.multi_reduction <add>, %191, %cst_118 [1] : vector<8x8xf32> to vector<8xf32>
    %193 = vector.shape_cast %192 : vector<8xf32> to vector<8x1xf32>
    %194 = tpu.reciprocal %193 {approx = true} : vector<8x1xf32> -> vector<8x1xf32>
    %195 = arith.truncf %191 : vector<8x8xf32> to vector<8x8xbf16>
    %cst_119 = arith.constant dense<0.000000e+00> : vector<8x32xf32>
    %196 = tpu.matmul %195, %185, %cst_119 {dimension_numbers = #tpu.dot_dimension_numbers<[1], [0], [0], [1], [0, 0, 1, 1], [], []>} : vector<8x8xbf16>, vector<8x32xbf16>, vector<8x32xf32> -> vector<8x32xf32>
    %197 = arith.mulf %194, %107 : vector<8x1xf32>
    %198 = vector.broadcast %197 : vector<8x1xf32> to vector<8x32xf32>
    %199 = arith.mulf %196, %198 : vector<8x32xf32>
    %200 = tpu.concatenate %148, %165, %182, %199 in 1 : vector<8x32xf32>, vector<8x32xf32>, vector<8x32xf32>, vector<8x32xf32> -> vector<8x128xf32>
    %c0_120 = arith.constant 0 : index
    %c0_121 = arith.constant 0 : index
    %201 = vector.load %arg8[%c0_120, %c0_121] : memref<8x128xf32, #tpu.memory_space<vmem>>, vector<8x128xf32>
    %202 = arith.addf %201, %200 : vector<8x128xf32>
    %c0_122 = arith.constant 0 : index
    %c0_123 = arith.constant 0 : index
    %203 = vector.load %arg8[%c0_122, %c0_123] : memref<8x128xf32, #tpu.memory_space<vmem>>, vector<8x128xf32>
    tpu.vector_store %arg8[%c0_122, %c0_123], %202 {strides = array<i32>} : memref<8x128xf32, #tpu.memory_space<vmem>>, vector<8x128xf32>,
    %c0_124 = arith.constant 0 : index
    %c0_125 = arith.constant 0 : index
    %204 = vector.load %arg8[%c0_124, %c0_125] : memref<8x128xf32, #tpu.memory_space<vmem>>, vector<8x128xf32>
    %c0_126 = arith.constant 0 : index
    %c0_127 = arith.constant 0 : index
    %c0_128 = arith.constant 0 : index
    %205 = vector.load %arg6[%c0_126, %c0_127, %c0_128] : memref<1x8x128xf32, #tpu.memory_space<vmem>>, vector<1x8x128xf32>
    %206 = vector.shape_cast %205 : vector<1x8x128xf32> to vector<8x128xf32>
    %207 = vector.shape_cast %204 : vector<8x128xf32> to vector<1x8x128xf32>
    tpu.vector_store %arg6[%c0_126, %c0_127, %c0_128], %207 {strides = array<i32>} : memref<1x8x128xf32, #tpu.memory_space<vmem>>, vector<1x8x128xf32>,
    return
  }
  func.func @transform_0(%arg0: i32, %arg1: i32) -> (i32, i32) {
    %c0_i32 = arith.constant 0 : i32
    %c0_i32_0 = arith.constant 0 : i32
    %c0_i32_1 = arith.constant 0 : i32
    return %c0_i32, %c0_i32_0 : i32, i32
  }
  func.func @transform_1(%arg0: i32, %arg1: i32) -> (i32, i32, i32) {
    %c0_i32 = arith.constant 0 : i32
    %c0_i32_0 = arith.constant 0 : i32
    return %arg0, %c0_i32, %arg1 : i32, i32, i32
  }
  func.func @transform_2(%arg0: i32, %arg1: i32) -> (i32, i32, i32) {
    %c0_i32 = arith.constant 0 : i32
    %c0_i32_0 = arith.constant 0 : i32
    return %arg0, %c0_i32, %arg1 : i32, i32, i32
  }
  func.func @transform_3(%arg0: i32, %arg1: i32) -> (i32, i32, i32) {
    %c0_i32 = arith.constant 0 : i32
    %c0_i32_0 = arith.constant 0 : i32
    return %arg0, %c0_i32, %arg1 : i32, i32, i32
  }
  func.func @transform_4(%arg0: i32, %arg1: i32) -> (i32, i32, i32) {
    %c0_i32 = arith.constant 0 : i32
    %c0_i32_0 = arith.constant 0 : i32
    return %arg0, %c0_i32, %arg1 : i32, i32, i32
  }
}

</mosaic_0001>

<llo_original>
// kernel: tpu_custom_call.1
$region0: #{tpu_custom_call.1}
  #allocation0 [shape = 'u32[]', space=smem, size = 0x4, offset = 0x4, fixed_abs, tag = 'smem constant byte address 0x4 - core index']
  #allocation1 [shape = 'u32[72,128]{1,0:T(1,128)}', space=vmem, size = 0x9000, scoped, tag = 'internal scratch']
  #allocation2 [shape = 'f32[8,128]{1,0:T(8,128)}', space=vmem, size = 0x1000, scoped, tag = 'scratch operand']
  #allocation3 [shape = 'f32[8,128]{1,0:T(8,128)}', space=vmem, size = 0x1000, scoped, tag = 'scratch operand']
  #allocation4 [shape = 'bf16[8,128]{1,0:T(8,128)(2,1)}', space=vmem, size = 0x800, scoped, tag = 'scratch operand']
  #allocation5 [shape = 'bf16[8,128]{1,0:T(8,128)(2,1)}', space=vmem, size = 0x800, scoped, tag = 'scratch operand']
  #allocation6 [shape = 'bf16[8,128]{1,0:T(8,128)(2,1)}', space=vmem, size = 0x800, scoped, tag = 'scratch operand']
  %s0 = inlined_call_operand.vmem [shape: s32[8,1], index: 0, kind: input, shape index: {}]
  %s1 = inlined_call_operand.hbm [shape: f32[2,8,128], index: 1, kind: input, shape index: {}]
  %s2 = inlined_call_operand.hbm [shape: f32[2,8,128], index: 2, kind: input, shape index: {}]
  %s3 = inlined_call_operand.hbm [shape: f32[2,8,128], index: 3, kind: input, shape index: {}]
  %s4 = inlined_call_operand.hbm [shape: f32[2,8,128], index: 4, kind: output, shape index: {}]
  %s5 = sld [smem:[#allocation0]]
  $region61: #{tpu_custom_call.1} parent=0
    _
  %s7 = ssub.s32 1, %s5
  %s8 = scalar_select 0, %s7, %s5
  $region1: #{tpu_custom_call.1} parent=0
    #allocation7 [shape = 'u8[8192]{0}', space=vmem, size = 0x2000, scoped, tag = 'input window, operand 1']
    #allocation8 [shape = 's32[2]{0}', space=sflag, size = 0x8, scoped, tag = 'scoped memory for tpu_custom_call.1']
    #allocation9 [shape = 's32[2]{0}', space=sflag, size = 0x8, scoped, tag = 'scoped memory for tpu_custom_call.1']
    #allocation10 [shape = 'u8[8192]{0}', space=vmem, size = 0x2000, scoped, tag = 'input window, operand 2']
    #allocation11 [shape = 's32[2]{0}', space=sflag, size = 0x8, scoped, tag = 'scoped memory for tpu_custom_call.1']
    #allocation12 [shape = 'u8[8192]{0}', space=vmem, size = 0x2000, scoped, tag = 'input window, operand 3']
    #allocation13 [shape = 'u8[8192]{0}', space=vmem, size = 0x2000, scoped, tag = 'output window, operand 0']
    %9 = vsyncpa [#allocation8], 0
    %s10 = scalar_lea.sflag [#allocation8], 1
    %11 = vsyncpa %s10, 0
    %12 = vsyncpa [#allocation11], 0
    %s13 = scalar_lea.sflag [#allocation11], 1
    %14 = vsyncpa %s13, 0
    %15 = vsyncpa [#allocation9], 0
    %s16 = scalar_lea.sflag [#allocation9], 1
    %17 = vsyncpa %s16, 0
    loop: start=0, step=1, limit=4
    $region2: #{tpu_custom_call.1} parent=1 // loop_pre_header
      _
    $region3: #{tpu_custom_call.1} parent=1 // loop_header
      %s19 = sphi 0, %s23
      %p20 = scmp.ge.s32.totalorder %s19, 4
      %s26 = sphi 0, %s38
      %s27 = sphi 0, %s34
      %s28 = sphi 0, %s26
      %s29 = sphi 0, %s27
      %s30 = sphi 0, %s28
      %s31 = sphi 0, %s29
      %s39 = sphi 0, %s39
      %s41 = sphi 0, %s39
      %s42 = sphi 0, %s41
      %s56 = sphi 0, %s42
      %s64 = sphi 0, %s66
      %s67 = sphi 0, %s64
      %s68 = sphi 0, %s67
      %s84 = sphi 0, %s68
      %s92 = sphi 0, %s94
      %s95 = sphi 0, %s92
      %s96 = sphi 0, %s95
      %s112 = sphi 0, %s96
      %s120 = sphi 0, %s122
      %s123 = sphi 0, %s120
      %s124 = sphi 0, %s123
      %s140 = sphi 0, %s124
      %s148 = sphi 0, %s150
      %s151 = sphi 0, %s148
      %s152 = sphi 0, %s151
      %s168 = sphi 0, %s152
    $region4: #{tpu_custom_call.1} parent=1 // loop_header_branch
      %22 = sbr.rel (%p20) target = $region8
    $region5: #{tpu_custom_call.1} parent=1 // loop_body
      %s24 = ssub.s32 %s19, 1
      %s25 = ssub.s32 %s19, 2
      %s32 = sadd.s32 1, %s27
      %p33 = scmp.ge.s32.totalorder %s32, 1
      %s34 = scalar_select %p33, 0, %s32
      %s35 = sadd.s32 1, %s26
      %s36 = scalar_select %p33, %s35, %s26
      %p37 = scmp.ge.s32.totalorder %s36, 2
      %s38 = scalar_select %p37, 0, %s36
      %s40 = sadd.s32 %s39, 1
      %p43 = scmp.eq.s32.totalorder %s19, 1
      %p44 = scmp.ne.s32.totalorder %s39, %s41
      %p45 = scmp.eq.s32.totalorder %s19, 0
      %p46 = por %p44, %p45
      %p47 = scmp.ne.s32.totalorder %s39, %s41
      %p48 = scmp.eq.s32.totalorder %s24, 1
      %p49 = por %p47, %p48
      %p50 = scmp.ne.s32.totalorder %s41, %s42
      %p51 = scmp.eq.s32.totalorder %s24, 0
      %p52 = por %p50, %p51
      %p53 = scmp.ne.s32.totalorder %s41, %s42
      %p54 = scmp.eq.s32.totalorder %s25, 1
      %p55 = por %p53, %p54
      %p57 = scmp.ne.s32.totalorder %s42, %s56
      %p58 = scmp.eq.s32.totalorder %s25, 0
      %p59 = por %p57, %p58
      %s60 = ssub.s32 %s26, %s38
      %s61 = ssub.s32 %s27, %s34
      %s62 = sor.u32 %s60, %s61
      %p63 = scmp.eq.s32.totalorder %s62, 0
      %s65 = sadd.s32 %s64, 1
      %s66 = scalar_select %p63, %s64, %s65
      %p69 = pneg %p63
      %p70 = scmp.eq.s32.totalorder %s19, 1
      %p71 = por %p69, %p70
      %p72 = scmp.ne.s32.totalorder %s64, %s67
      %p73 = scmp.eq.s32.totalorder %s19, 0
      %p74 = por %p72, %p73
      %p75 = scmp.ne.s32.totalorder %s64, %s67
      %p76 = scmp.eq.s32.totalorder %s24, 1
      %p77 = por %p75, %p76
      %p78 = scmp.ne.s32.totalorder %s67, %s68
      %p79 = scmp.eq.s32.totalorder %s24, 0
      %p80 = por %p78, %p79
      %p81 = scmp.ne.s32.totalorder %s67, %s68
      %p82 = scmp.eq.s32.totalorder %s25, 1
      %p83 = por %p81, %p82
      %p85 = scmp.ne.s32.totalorder %s68, %s84
      %p86 = scmp.eq.s32.totalorder %s25, 0
      %p87 = por %p85, %p86
      %s88 = ssub.s32 %s26, %s38
      %s89 = ssub.s32 %s27, %s34
      %s90 = sor.u32 %s88, %s89
      %p91 = scmp.eq.s32.totalorder %s90, 0
      %s93 = sadd.s32 %s92, 1
      %s94 = scalar_select %p91, %s92, %s93
      %p97 = pneg %p91
      %p98 = scmp.eq.s32.totalorder %s19, 1
      %p99 = por %p97, %p98
      %p100 = scmp.ne.s32.totalorder %s92, %s95
      %p101 = scmp.eq.s32.totalorder %s19, 0
      %p102 = por %p100, %p101
      %p103 = scmp.ne.s32.totalorder %s92, %s95
      %p104 = scmp.eq.s32.totalorder %s24, 1
      %p105 = por %p103, %p104
      %p106 = scmp.ne.s32.totalorder %s95, %s96
      %p107 = scmp.eq.s32.totalorder %s24, 0
      %p108 = por %p106, %p107
      %p109 = scmp.ne.s32.totalorder %s95, %s96
      %p110 = scmp.eq.s32.totalorder %s25, 1
      %p111 = por %p109, %p110
      %p113 = scmp.ne.s32.totalorder %s96, %s112
      %p114 = scmp.eq.s32.totalorder %s25, 0
      %p115 = por %p113, %p114
      %s116 = ssub.s32 %s26, %s38
      %s117 = ssub.s32 %s27, %s34
      %s118 = sor.u32 %s116, %s117
      %p119 = scmp.eq.s32.totalorder %s118, 0
      %s121 = sadd.s32 %s120, 1
      %s122 = scalar_select %p119, %s120, %s121
      %p125 = pneg %p119
      %p126 = scmp.eq.s32.totalorder %s19, 1
      %p127 = por %p125, %p126
      %p128 = scmp.ne.s32.totalorder %s120, %s123
      %p129 = scmp.eq.s32.totalorder %s19, 0
      %p130 = por %p128, %p129
      %p131 = scmp.ne.s32.totalorder %s120, %s123
      %p132 = scmp.eq.s32.totalorder %s24, 1
      %p133 = por %p131, %p132
      %p134 = scmp.ne.s32.totalorder %s123, %s124
      %p135 = scmp.eq.s32.totalorder %s24, 0
      %p136 = por %p134, %p135
      %p137 = scmp.ne.s32.totalorder %s123, %s124
      %p138 = scmp.eq.s32.totalorder %s25, 1
      %p139 = por %p137, %p138
      %p141 = scmp.ne.s32.totalorder %s124, %s140
      %p142 = scmp.eq.s32.totalorder %s25, 0
      %p143 = por %p141, %p142
      %s144 = ssub.s32 %s26, %s38
      %s145 = ssub.s32 %s27, %s34
      %s146 = sor.u32 %s144, %s145
      %p147 = scmp.eq.s32.totalorder %s146, 0
      %s149 = sadd.s32 %s148, 1
      %s150 = scalar_select %p147, %s148, %s149
      %p153 = pneg %p147
      %p154 = scmp.eq.s32.totalorder %s19, 1
      %p155 = por %p153, %p154
      %p156 = scmp.ne.s32.totalorder %s148, %s151
      %p157 = scmp.eq.s32.totalorder %s19, 0
      %p158 = por %p156, %p157
      %p159 = scmp.ne.s32.totalorder %s148, %s151
      %p160 = scmp.eq.s32.totalorder %s24, 1
      %p161 = por %p159, %p160
      %p162 = scmp.ne.s32.totalorder %s151, %s152
      %p163 = scmp.eq.s32.totalorder %s24, 0
      %p164 = por %p162, %p163
      %p165 = scmp.ne.s32.totalorder %s151, %s152
      %p166 = scmp.eq.s32.totalorder %s25, 1
      %p167 = por %p165, %p166
      %p169 = scmp.ne.s32.totalorder %s152, %s168
      %p170 = scmp.eq.s32.totalorder %s25, 0
      %p171 = por %p169, %p170
      %p172 = scmp.le.s32.totalorder 1, %s19
      %p173 = scmp.lt.s32.totalorder %s19, 3
      %p174 = pnand %p172, %p173
      %p175 = pneg %p174
      // Predicated region
      $region9: #{tpu_custom_call.1} parent=5 // pred_check
        _
      $region10: #{tpu_custom_call.1} parent=5 // pred_check_branch
        %177 = sbr.rel (%p174) target = $region12
      $region11: #{tpu_custom_call.1} parent=5 // pred_region
        %s178 = ssub.s32 %s19, 1
        // Predicated region
        $region13: #{tpu_custom_call.1} parent=11 // pred_check
          %p179 = pneg %p52
        $region14: #{tpu_custom_call.1} parent=11 // pred_check_branch
          %181 = sbr.rel (%p179) target = $region16
        $region15: #{tpu_custom_call.1} parent=11 // pred_region
          _
        $region16: #{tpu_custom_call.1} parent=11 // pred_fallthru
          _
      $region12: #{tpu_custom_call.1} parent=5 // pred_fallthru
        _
      %p182 = scmp.lt.s32.totalorder %s19, 2
      // Predicated region
      $region17: #{tpu_custom_call.1} parent=5 // pred_check
        %p183 = pneg %p182
      $region18: #{tpu_custom_call.1} parent=5 // pred_check_branch
        %185 = sbr.rel (%p183) target = $region20
      $region19: #{tpu_custom_call.1} parent=5 // pred_region
        // Predicated region
        $region21: #{tpu_custom_call.1} parent=19 // pred_check
          %p186 = pneg %p74
        $region22: #{tpu_custom_call.1} parent=19 // pred_check_branch
          %188 = sbr.rel (%p186) target = $region24
        $region23: #{tpu_custom_call.1} parent=19 // pred_region
          %s189 = sand.u32 %s64, 1
          %s190 = scalar_lea.sflag [#allocation8], %s189
          %s191 = sand.u32 %s64, 1
          %s192 = smul.addr %s191, 8
          %s193 = scalar_lea.vmem [#allocation7], %s192
          %195 = vsyncadd %s190, 0
          %s196 = sadd.s32 %s27, %s26
          %s197 = smul.addr %s196, 8
          %s198 = scalar_lea.hbm %s1, %s197
          %s200 = sshll.u32 %s198, 4
          %s201 = int_to_ptr.hbm [resolvable:$true] %s200
          %s202 = sshll.u32 %s193, 4
          %s203 = int_to_ptr.vmem [resolvable:$true] %s202
          %205 = dma.hbm_to_vmem [thread:$0]  %s201, 128, %s203, %s190
        $region24: #{tpu_custom_call.1} parent=19 // pred_fallthru
          _
        // Predicated region
        $region25: #{tpu_custom_call.1} parent=19 // pred_check
          %p206 = pneg %p102
        $region26: #{tpu_custom_call.1} parent=19 // pred_check_branch
          %208 = sbr.rel (%p206) target = $region28
        $region27: #{tpu_custom_call.1} parent=19 // pred_region
          %s209 = sand.u32 %s19, 1
          %s210 = scalar_lea.sflag [#allocation11], %s209
          %s211 = sand.u32 %s92, 1
          %s212 = smul.addr %s211, 8
          %s213 = scalar_lea.vmem [#allocation10], %s212
          %215 = vsyncadd %s210, 0
          %s216 = sadd.s32 %s27, %s26
          %s217 = smul.addr %s216, 8
          %s218 = scalar_lea.hbm %s2, %s217
          %s220 = sshll.u32 %s218, 4
          %s221 = int_to_ptr.hbm [resolvable:$true] %s220
          %s222 = sshll.u32 %s213, 4
          %s223 = int_to_ptr.vmem [resolvable:$true] %s222
          %225 = dma.hbm_to_vmem [thread:$0]  %s221, 128, %s223, %s210
        $region28: #{tpu_custom_call.1} parent=19 // pred_fallthru
          _
        // Predicated region
        $region29: #{tpu_custom_call.1} parent=19 // pred_check
          %p226 = pneg %p130
        $region30: #{tpu_custom_call.1} parent=19 // pred_check_branch
          %228 = sbr.rel (%p226) target = $region32
        $region31: #{tpu_custom_call.1} parent=19 // pred_region
          %s229 = sand.u32 %s19, 1
          %s230 = scalar_lea.sflag [#allocation11], %s229
          %s231 = sand.u32 %s120, 1
          %s232 = smul.addr %s231, 8
          %s233 = scalar_lea.vmem [#allocation12], %s232
          %235 = vsyncadd %s230, 0
          %s236 = sadd.s32 %s27, %s26
          %s237 = smul.addr %s236, 8
          %s238 = scalar_lea.hbm %s3, %s237
          %s240 = sshll.u32 %s238, 4
          %s241 = int_to_ptr.hbm [resolvable:$true] %s240
          %s242 = sshll.u32 %s233, 4
          %s243 = int_to_ptr.vmem [resolvable:$true] %s242
          %245 = dma.hbm_to_vmem [thread:$0]  %s241, 128, %s243, %s230
        $region32: #{tpu_custom_call.1} parent=19 // pred_fallthru
          _
      $region20: #{tpu_custom_call.1} parent=5 // pred_fallthru
        _
      %p246 = scmp.le.s32.totalorder 1, %s19
      %p247 = scmp.lt.s32.totalorder %s19, 3
      %p248 = pnand %p246, %p247
      %p249 = pneg %p248
      // Predicated region
      $region33: #{tpu_custom_call.1} parent=5 // pred_check
        _
      $region34: #{tpu_custom_call.1} parent=5 // pred_check_branch
        %251 = sbr.rel (%p248) target = $region36
      $region35: #{tpu_custom_call.1} parent=5 // pred_region
        %s252 = ssub.s32 %s19, 1
        %s253 = sand.u32 %s67, 1
        %s254 = scalar_lea.sflag [#allocation8], %s253
        %s255 = sand.u32 %s67, 1
        %s256 = smul.addr %s255, 8
        %s257 = scalar_lea.vmem [#allocation7], %s256
        // Predicated region
        $region37: #{tpu_custom_call.1} parent=35 // pred_check
          %p258 = pneg %p80
        $region38: #{tpu_custom_call.1} parent=35 // pred_check_branch
          %260 = sbr.rel (%p258) target = $region40
        $region39: #{tpu_custom_call.1} parent=35 // pred_region
          %262 = dma.done %s254, 128
        $region40: #{tpu_custom_call.1} parent=35 // pred_fallthru
          _
        %s263 = sand.u32 %s24, 1
        %s264 = scalar_lea.sflag [#allocation11], %s263
        %s265 = sand.u32 %s95, 1
        %s266 = smul.addr %s265, 8
        %s267 = scalar_lea.vmem [#allocation10], %s266
        // Predicated region
        $region41: #{tpu_custom_call.1} parent=35 // pred_check
          %p268 = pneg %p108
        $region42: #{tpu_custom_call.1} parent=35 // pred_check_branch
          %270 = sbr.rel (%p268) target = $region44
        $region43: #{tpu_custom_call.1} parent=35 // pred_region
          %272 = dma.done %s264, 128
        $region44: #{tpu_custom_call.1} parent=35 // pred_fallthru
          _
        %s273 = sand.u32 %s24, 1
        %s274 = scalar_lea.sflag [#allocation11], %s273
        %s275 = sand.u32 %s123, 1
        %s276 = smul.addr %s275, 8
        %s277 = scalar_lea.vmem [#allocation12], %s276
        // Predicated region
        $region45: #{tpu_custom_call.1} parent=35 // pred_check
          %p278 = pneg %p136
        $region46: #{tpu_custom_call.1} parent=35 // pred_check_branch
          %280 = sbr.rel (%p278) target = $region48
        $region47: #{tpu_custom_call.1} parent=35 // pred_region
          %282 = dma.done %s274, 128
        $region48: #{tpu_custom_call.1} parent=35 // pred_fallthru
          _
        %p283 = pneg %p52
        %p284 = pneg %p49
        %s285 = sand.u32 %s67, 1
        %s286 = scalar_lea.sflag [#allocation8], %s285
        %s287 = sand.u32 %s67, 1
        %s288 = smul.addr %s287, 8
        %s289 = scalar_lea.vmem [#allocation7], %s288
        %p290 = pneg %p80
        %p291 = pneg %p77
        %s292 = sand.u32 %s24, 1
        %s293 = scalar_lea.sflag [#allocation11], %s292
        %s294 = sand.u32 %s95, 1
        %s295 = smul.addr %s294, 8
        %s296 = scalar_lea.vmem [#allocation10], %s295
        %p297 = pneg %p108
        %p298 = pneg %p105
        %s299 = sand.u32 %s24, 1
        %s300 = scalar_lea.sflag [#allocation11], %s299
        %s301 = sand.u32 %s123, 1
        %s302 = smul.addr %s301, 8
        %s303 = scalar_lea.vmem [#allocation12], %s302
        %p304 = pneg %p136
        %p305 = pneg %p133
        %p306 = pneg %p164
        %p307 = pneg %p161
        %s308 = sand.u32 %s151, 1
        %s309 = scalar_lea.sflag [#allocation9], %s308
        %s310 = sand.u32 %s151, 1
        %s311 = smul.addr %s310, 8
        %s312 = scalar_lea.vmem [#allocation13], %s311
        %v314 = vld [vmem:[%s0] sm:$0xff]
        %vm315 = vcmp.eq.s32.totalorder %v314, 1
        %vm316 = vcmp.eq.s32.totalorder %v314, 4294967295
        %vm317 = vmor %vm315, %vm316
        %v318 = vsel %vm317, 1.0, 0.0
        %v319 = vld [vmem:[%s257] sm:$0xff]
        %v320 = vld [vmem:[%s267] sm:$0xff]
        %v321 = vld [vmem:[%s277] sm:$0xff]
        %v322 = vmul.f32 %v318, 0.17677669
        %324 = vset.pattern.permute.xlu0 0
        %325 = vperm.xlu0 %324, %v322
        %v326 = vpop.permute.xlu0 %325
        %v328 = vmul.f32 %v319, %v326
        %330 = vset.pattern.permute.xlu0 0
        %331 = vperm.xlu0 %330, %v318
        %v332 = vpop.permute.xlu0 %331
        %v334 = vmul.f32 %v320, %v332
        %v335 = vmul.f32 %v321, %v332
        %v336 = vpack.c.bf16 %v328, %v328
        %337 = vst [vmem:[#allocation4] sm:$0xf] %v336
        %v338 = vpack.c.bf16 %v334, %v334
        %339 = vst [vmem:[#allocation5] sm:$0xf] %v338
        %v340 = vpack.c.bf16 %v335, %v335
        %341 = vst [vmem:[#allocation6] sm:$0xf] %v340
        %v342 = vld [vmem:[#allocation4] sm:$0xf]
        %v343 = vld [vmem:[#allocation5] sm:$0xf]
        %v344 = vld [vmem:[#allocation6] sm:$0xf]
        %vm345 = vcmask 261120
        %v347 = vsel %vm345, %v342, 0
        %v350 = vsel %vm345, %v343, 0
        %352 = vmatpush.bf16.xpose.msra.mxu0 0
        %353 = vmatpush.bf16.xpose.msra.mxu0 0
        %354 = vmatpush.bf16.xpose.msra.mxu0 0
        %355 = vmatpush.bf16.xpose.msra.mxu0 0
        %356 = vmatpush.bf16.xpose.msra.mxu0 0
        %357 = vmatpush.bf16.xpose.msra.mxu0 0
        %358 = vmatpush.bf16.xpose.msra.mxu0 0
        %359 = vmatpush.bf16.xpose.msra.mxu0 %v350
        %360 = vmatmul.bf16.gmra.mxu0 %v347
        %v361 = vpop.f32.mrf.mxu0
        %v362 = vadd.f32 0.0, %v361
        %v363 = vpop.f32.mrf.mxu0
        %364 = vdwg.mxu0
        %vm365 = vcmask 64512
        %v366 = vsel %vm365, %v362, -inf
        %367 = vmax.xlane.f32.xlu0 %v366
        %v368 = vpop.xlane.xlu0 %367
        %v369 = vsub.f32 %v362, %v368
        %v370 = vmul.f32 %v369, 1.442695
        %v371 = vpow.pop %v370
        %v372 = vsel %vm365, %v371, 0.0
        %373 = vadd.xlane.f32.xlu0 %v372
        %v374 = vpop.xlane.xlu0 %373
        %v375 = vrcp.pop %v374
        %v376 = vpack.c.bf16 %v371, %v371
        %v378 = vsel %vm365, %v376, 0
        %vm380 = vcmask 1043456
        %v382 = vsel %vm380, %v344, 0
        %384 = vmatpush.bf16.msra.mxu0 0
        %385 = vmatpush.bf16.msra.mxu0 0
        %386 = vmatpush.bf16.msra.mxu0 0
        %387 = vmatpush.bf16.msra.mxu0 0
        %388 = vmatpush.bf16.msra.mxu0 0
        %389 = vmatpush.bf16.msra.mxu0 0
        %390 = vmatpush.bf16.msra.mxu0 0
        %391 = vmatpush.bf16.msra.mxu0 %v382
        %392 = vmatmul.bf16.gmra.mxu0 %v378
        %v393 = vpop.f32.mrf.mxu0
        %v394 = vadd.f32 0.0, %v393
        %v395 = vpop.f32.mrf.mxu0
        %396 = vdwg.mxu0
        %v397 = vmul.f32 %v375, %v318
        %399 = vset.pattern.permute.xlu0 0
        %400 = vperm.xlu0 %399, %v397
        %v401 = vpop.permute.xlu0 %400
        %v403 = vmul.f32 %v394, %v401
        %v405 = vunpack.c.l.b16 %v342
        %v406 = vpack.c.b16 %v405, %v405
        %407 = vrot.lane.b32.xlu0 %v406, 96
        %v408 = vpop.permute.xlu0 %407
        %v410 = vunpack.c.l.b16 %v343
        %v411 = vpack.c.b16 %v410, %v410
        %412 = vrot.lane.b32.xlu0 %v411, 96
        %v413 = vpop.permute.xlu0 %412
        %v415 = vsel %vm345, %v408, 0
        %v418 = vsel %vm345, %v413, 0
        %420 = vmatpush.bf16.xpose.msra.mxu0 0
        %421 = vmatpush.bf16.xpose.msra.mxu0 0
        %422 = vmatpush.bf16.xpose.msra.mxu0 0
        %423 = vmatpush.bf16.xpose.msra.mxu0 0
        %424 = vmatpush.bf16.xpose.msra.mxu0 0
        %425 = vmatpush.bf16.xpose.msra.mxu0 0
        %426 = vmatpush.bf16.xpose.msra.mxu0 0
        %427 = vmatpush.bf16.xpose.msra.mxu0 %v418
        %428 = vmatmul.bf16.gmra.mxu0 %v415
        %v429 = vpop.f32.mrf.mxu0
        %v430 = vadd.f32 0.0, %v429
        %v431 = vpop.f32.mrf.mxu0
        %432 = vdwg.mxu0
        %v433 = vsel %vm365, %v430, -inf
        %434 = vmax.xlane.f32.xlu0 %v433
        %v435 = vpop.xlane.xlu0 %434
        %v436 = vsub.f32 %v430, %v435
        %v437 = vmul.f32 %v436, 1.442695
        %v438 = vpow.pop %v437
        %v439 = vsel %vm365, %v438, 0.0
        %440 = vadd.xlane.f32.xlu0 %v439
        %v441 = vpop.xlane.xlu0 %440
        %v442 = vrcp.pop %v441
        %v443 = vpack.c.bf16 %v438, %v438
        %v445 = vunpack.c.l.b16 %v344
        %v446 = vpack.c.b16 %v445, %v445
        %447 = vrot.lane.b32.xlu0 %v446, 96
        %v448 = vpop.permute.xlu0 %447
        %v450 = vsel %vm365, %v443, 0
        %v453 = vsel %vm380, %v448, 0
        %455 = vmatpush.bf16.msra.mxu0 0
        %456 = vmatpush.bf16.msra.mxu0 0
        %457 = vmatpush.bf16.msra.mxu0 0
        %458 = vmatpush.bf16.msra.mxu0 0
        %459 = vmatpush.bf16.msra.mxu0 0
        %460 = vmatpush.bf16.msra.mxu0 0
        %461 = vmatpush.bf16.msra.mxu0 0
        %462 = vmatpush.bf16.msra.mxu0 %v453
        %463 = vmatmul.bf16.gmra.mxu0 %v450
        %v464 = vpop.f32.mrf.mxu0
        %v465 = vadd.f32 0.0, %v464
        %v466 = vpop.f32.mrf.mxu0
        %467 = vdwg.mxu0
        %v468 = vmul.f32 %v442, %v318
        %470 = vset.pattern.permute.xlu0 0
        %471 = vperm.xlu0 %470, %v468
        %v472 = vpop.permute.xlu0 %471
        %v474 = vmul.f32 %v465, %v472
        %475 = vrot.lane.b32.xlu0 %v406, 64
        %v476 = vpop.permute.xlu0 %475
        %477 = vrot.lane.b32.xlu0 %v411, 64
        %v478 = vpop.permute.xlu0 %477
        %v480 = vsel %vm345, %v476, 0
        %v483 = vsel %vm345, %v478, 0
        %485 = vmatpush.bf16.xpose.msra.mxu0 0
        %486 = vmatpush.bf16.xpose.msra.mxu0 0
        %487 = vmatpush.bf16.xpose.msra.mxu0 0
        %488 = vmatpush.bf16.xpose.msra.mxu0 0
        %489 = vmatpush.bf16.xpose.msra.mxu0 0
        %490 = vmatpush.bf16.xpose.msra.mxu0 0
        %491 = vmatpush.bf16.xpose.msra.mxu0 0
        %492 = vmatpush.bf16.xpose.msra.mxu0 %v483
        %493 = vmatmul.bf16.gmra.mxu0 %v480
        %v494 = vpop.f32.mrf.mxu0
        %v495 = vadd.f32 0.0, %v494
        %v496 = vpop.f32.mrf.mxu0
        %497 = vdwg.mxu0
        %v498 = vsel %vm365, %v495, -inf
        %499 = vmax.xlane.f32.xlu0 %v498
        %v500 = vpop.xlane.xlu0 %499
        %v501 = vsub.f32 %v495, %v500
        %v502 = vmul.f32 %v501, 1.442695
        %v503 = vpow.pop %v502
        %v504 = vsel %vm365, %v503, 0.0
        %505 = vadd.xlane.f32.xlu0 %v504
        %v506 = vpop.xlane.xlu0 %505
        %v507 = vrcp.pop %v506
        %v508 = vpack.c.bf16 %v503, %v503
        %509 = vrot.lane.b32.xlu0 %v446, 64
        %v510 = vpop.permute.xlu0 %509
        %v512 = vsel %vm365, %v508, 0
        %v515 = vsel %vm380, %v510, 0
        %517 = vmatpush.bf16.msra.mxu0 0
        %518 = vmatpush.bf16.msra.mxu0 0
        %519 = vmatpush.bf16.msra.mxu0 0
        %520 = vmatpush.bf16.msra.mxu0 0
        %521 = vmatpush.bf16.msra.mxu0 0
        %522 = vmatpush.bf16.msra.mxu0 0
        %523 = vmatpush.bf16.msra.mxu0 0
        %524 = vmatpush.bf16.msra.mxu0 %v515
        %525 = vmatmul.bf16.gmra.mxu0 %v512
        %v526 = vpop.f32.mrf.mxu0
        %v527 = vadd.f32 0.0, %v526
        %v528 = vpop.f32.mrf.mxu0
        %529 = vdwg.mxu0
        %v530 = vmul.f32 %v507, %v318
        %532 = vset.pattern.permute.xlu0 0
        %533 = vperm.xlu0 %532, %v530
        %v534 = vpop.permute.xlu0 %533
        %v536 = vmul.f32 %v527, %v534
        %537 = vrot.lane.b32.xlu0 %v406, 32
        %v538 = vpop.permute.xlu0 %537
        %539 = vrot.lane.b32.xlu0 %v411, 32
        %v540 = vpop.permute.xlu0 %539
        %v542 = vsel %vm345, %v538, 0
        %v545 = vsel %vm345, %v540, 0
        %547 = vmatpush.bf16.xpose.msra.mxu0 0
        %548 = vmatpush.bf16.xpose.msra.mxu0 0
        %549 = vmatpush.bf16.xpose.msra.mxu0 0
        %550 = vmatpush.bf16.xpose.msra.mxu0 0
        %551 = vmatpush.bf16.xpose.msra.mxu0 0
        %552 = vmatpush.bf16.xpose.msra.mxu0 0
        %553 = vmatpush.bf16.xpose.msra.mxu0 0
        %554 = vmatpush.bf16.xpose.msra.mxu0 %v545
        %555 = vmatmul.bf16.gmra.mxu0 %v542
        %v556 = vpop.f32.mrf.mxu0
        %v557 = vadd.f32 0.0, %v556
        %v558 = vpop.f32.mrf.mxu0
        %559 = vdwg.mxu0
        %v560 = vsel %vm365, %v557, -inf
        %561 = vmax.xlane.f32.xlu0 %v560
        %v562 = vpop.xlane.xlu0 %561
        %v563 = vsub.f32 %v557, %v562
        %v564 = vmul.f32 %v563, 1.442695
        %v565 = vpow.pop %v564
        %v566 = vsel %vm365, %v565, 0.0
        %567 = vadd.xlane.f32.xlu0 %v566
        %v568 = vpop.xlane.xlu0 %567
        %v569 = vrcp.pop %v568
        %v570 = vpack.c.bf16 %v565, %v565
        %571 = vrot.lane.b32.xlu0 %v446, 32
        %v572 = vpop.permute.xlu0 %571
        %v574 = vsel %vm365, %v570, 0
        %v577 = vsel %vm380, %v572, 0
        %579 = vmatpush.bf16.msra.mxu0 0
        %580 = vmatpush.bf16.msra.mxu0 0
        %581 = vmatpush.bf16.msra.mxu0 0
        %582 = vmatpush.bf16.msra.mxu0 0
        %583 = vmatpush.bf16.msra.mxu0 0
        %584 = vmatpush.bf16.msra.mxu0 0
        %585 = vmatpush.bf16.msra.mxu0 0
        %586 = vmatpush.bf16.msra.mxu0 %v577
        %587 = vmatmul.bf16.gmra.mxu0 %v574
        %v588 = vpop.f32.mrf.mxu0
        %v589 = vadd.f32 0.0, %v588
        %v590 = vpop.f32.mrf.mxu0
        %591 = vdwg.mxu0
        %v592 = vmul.f32 %v569, %v318
        %594 = vset.pattern.permute.xlu0 0
        %595 = vperm.xlu0 %594, %v592
        %v596 = vpop.permute.xlu0 %595
        %v598 = vmul.f32 %v589, %v596
        %600 = vrot.lane.b32.xlu0 %v474, 32
        %v601 = vpop.permute.xlu0 %600
        %604 = vrot.lane.b32.xlu0 %v536, 64
        %v605 = vpop.permute.xlu0 %604
        %608 = vrot.lane.b32.xlu0 %v598, 96
        %v609 = vpop.permute.xlu0 %608
        %v611 = vsel %vm345, %v403, %v601
        %vm612 = vcmask 523264
        %v613 = vsel %vm612, %v611, %v605
        %vm614 = vcmask 785408
        %v615 = vsel %vm614, %v613, %v609
        %616 = vst [vmem:[#allocation3] sm:$0xff] %v615
        %617 = vst [vmem:[#allocation2] sm:$0xff] %v615
        %vm618 = vcmp.eq.s32.totalorder %v314, 2
        %vm619 = vmor %vm618, %vm316
        %v620 = vsel %vm619, 1.0, 0.0
        %v621 = vld [vmem:[%s257] sm:$0xff]
        %v622 = vld [vmem:[%s267] sm:$0xff]
        %v623 = vld [vmem:[%s277] sm:$0xff]
        %v624 = vld [vmem:[#allocation2] sm:$0xff]
        %626 = vset.pattern.permute.xlu0 0
        %627 = vperm.xlu0 %626, %v620
        %v628 = vpop.permute.xlu0 %627
        %v630 = vmul.f32 %v621, %v628
        %v631 = vadd.f32 %v630, %v624
        %v632 = vmul.f32 %v631, 0.17677669
        %v633 = vmul.f32 %v622, %v628
        %v634 = vadd.f32 %v633, %v624
        %v635 = vmul.f32 %v623, %v628
        %v636 = vadd.f32 %v635, %v624
        %v637 = vpack.c.bf16 %v632, %v632
        %638 = vst [vmem:[#allocation4] sm:$0xf] %v637
        %v639 = vpack.c.bf16 %v634, %v634
        %640 = vst [vmem:[#allocation5] sm:$0xf] %v639
        %v641 = vpack.c.bf16 %v636, %v636
        %642 = vst [vmem:[#allocation6] sm:$0xf] %v641
        %v643 = vld [vmem:[#allocation4] sm:$0xf]
        %v644 = vld [vmem:[#allocation5] sm:$0xf]
        %v645 = vld [vmem:[#allocation6] sm:$0xf]
        %v647 = vsel %vm345, %v643, 0
        %v650 = vsel %vm345, %v644, 0
        %652 = vmatpush.bf16.xpose.msra.mxu0 0
        %653 = vmatpush.bf16.xpose.msra.mxu0 0
        %654 = vmatpush.bf16.xpose.msra.mxu0 0
        %655 = vmatpush.bf16.xpose.msra.mxu0 0
        %656 = vmatpush.bf16.xpose.msra.mxu0 0
        %657 = vmatpush.bf16.xpose.msra.mxu0 0
        %658 = vmatpush.bf16.xpose.msra.mxu0 0
        %659 = vmatpush.bf16.xpose.msra.mxu0 %v650
        %660 = vmatmul.bf16.gmra.mxu0 %v647
        %v661 = vpop.f32.mrf.mxu0
        %v662 = vadd.f32 0.0, %v661
        %v663 = vpop.f32.mrf.mxu0
        %664 = vdwg.mxu0
        %v665 = vsel %vm365, %v662, -inf
        %666 = vmax.xlane.f32.xlu0 %v665
        %v667 = vpop.xlane.xlu0 %666
        %v668 = vsub.f32 %v662, %v667
        %v669 = vmul.f32 %v668, 1.442695
        %v670 = vpow.pop %v669
        %v671 = vsel %vm365, %v670, 0.0
        %672 = vadd.xlane.f32.xlu0 %v671
        %v673 = vpop.xlane.xlu0 %672
        %v674 = vrcp.pop %v673
        %v675 = vpack.c.bf16 %v670, %v670
        %v677 = vsel %vm365, %v675, 0
        %v680 = vsel %vm380, %v645, 0
        %682 = vmatpush.bf16.msra.mxu0 0
        %683 = vmatpush.bf16.msra.mxu0 0
        %684 = vmatpush.bf16.msra.mxu0 0
        %685 = vmatpush.bf16.msra.mxu0 0
        %686 = vmatpush.bf16.msra.mxu0 0
        %687 = vmatpush.bf16.msra.mxu0 0
        %688 = vmatpush.bf16.msra.mxu0 0
        %689 = vmatpush.bf16.msra.mxu0 %v680
        %690 = vmatmul.bf16.gmra.mxu0 %v677
        %v691 = vpop.f32.mrf.mxu0
        %v692 = vadd.f32 0.0, %v691
        %v693 = vpop.f32.mrf.mxu0
        %694 = vdwg.mxu0
        %v695 = vmul.f32 %v674, %v620
        %697 = vset.pattern.permute.xlu0 0
        %698 = vperm.xlu0 %697, %v695
        %v699 = vpop.permute.xlu0 %698
        %v701 = vmul.f32 %v692, %v699
        %v703 = vunpack.c.l.b16 %v643
        %v704 = vpack.c.b16 %v703, %v703
        %705 = vrot.lane.b32.xlu0 %v704, 96
        %v706 = vpop.permute.xlu0 %705
        %v708 = vunpack.c.l.b16 %v644
        %v709 = vpack.c.b16 %v708, %v708
        %710 = vrot.lane.b32.xlu0 %v709, 96
        %v711 = vpop.permute.xlu0 %710
        %v713 = vsel %vm345, %v706, 0
        %v716 = vsel %vm345, %v711, 0
        %718 = vmatpush.bf16.xpose.msra.mxu0 0
        %719 = vmatpush.bf16.xpose.msra.mxu0 0
        %720 = vmatpush.bf16.xpose.msra.mxu0 0
        %721 = vmatpush.bf16.xpose.msra.mxu0 0
        %722 = vmatpush.bf16.xpose.msra.mxu0 0
        %723 = vmatpush.bf16.xpose.msra.mxu0 0
        %724 = vmatpush.bf16.xpose.msra.mxu0 0
        %725 = vmatpush.bf16.xpose.msra.mxu0 %v716
        %726 = vmatmul.bf16.gmra.mxu0 %v713
        %v727 = vpop.f32.mrf.mxu0
        %v728 = vadd.f32 0.0, %v727
        %v729 = vpop.f32.mrf.mxu0
        %730 = vdwg.mxu0
        %v731 = vsel %vm365, %v728, -inf
        %732 = vmax.xlane.f32.xlu0 %v731
        %v733 = vpop.xlane.xlu0 %732
        %v734 = vsub.f32 %v728, %v733
        %v735 = vmul.f32 %v734, 1.442695
        %v736 = vpow.pop %v735
        %v737 = vsel %vm365, %v736, 0.0
        %738 = vadd.xlane.f32.xlu0 %v737
        %v739 = vpop.xlane.xlu0 %738
        %v740 = vrcp.pop %v739
        %v741 = vpack.c.bf16 %v736, %v736
        %v743 = vunpack.c.l.b16 %v645
        %v744 = vpack.c.b16 %v743, %v743
        %745 = vrot.lane.b32.xlu0 %v744, 96
        %v746 = vpop.permute.xlu0 %745
        %v748 = vsel %vm365, %v741, 0
        %v751 = vsel %vm380, %v746, 0
        %753 = vmatpush.bf16.msra.mxu0 0
        %754 = vmatpush.bf16.msra.mxu0 0
        %755 = vmatpush.bf16.msra.mxu0 0
        %756 = vmatpush.bf16.msra.mxu0 0
        %757 = vmatpush.bf16.msra.mxu0 0
        %758 = vmatpush.bf16.msra.mxu0 0
        %759 = vmatpush.bf16.msra.mxu0 0
        %760 = vmatpush.bf16.msra.mxu0 %v751
        %761 = vmatmul.bf16.gmra.mxu0 %v748
        %v762 = vpop.f32.mrf.mxu0
        %v763 = vadd.f32 0.0, %v762
        %v764 = vpop.f32.mrf.mxu0
        %765 = vdwg.mxu0
        %v766 = vmul.f32 %v740, %v620
        %768 = vset.pattern.permute.xlu0 0
        %769 = vperm.xlu0 %768, %v766
        %v770 = vpop.permute.xlu0 %769
        %v772 = vmul.f32 %v763, %v770
        %773 = vrot.lane.b32.xlu0 %v704, 64
        %v774 = vpop.permute.xlu0 %773
        %775 = vrot.lane.b32.xlu0 %v709, 64
        %v776 = vpop.permute.xlu0 %775
        %v778 = vsel %vm345, %v774, 0
        %v781 = vsel %vm345, %v776, 0
        %783 = vmatpush.bf16.xpose.msra.mxu0 0
        %784 = vmatpush.bf16.xpose.msra.mxu0 0
        %785 = vmatpush.bf16.xpose.msra.mxu0 0
        %786 = vmatpush.bf16.xpose.msra.mxu0 0
        %787 = vmatpush.bf16.xpose.msra.mxu0 0
        %788 = vmatpush.bf16.xpose.msra.mxu0 0
        %789 = vmatpush.bf16.xpose.msra.mxu0 0
        %790 = vmatpush.bf16.xpose.msra.mxu0 %v781
        %791 = vmatmul.bf16.gmra.mxu0 %v778
        %v792 = vpop.f32.mrf.mxu0
        %v793 = vadd.f32 0.0, %v792
        %v794 = vpop.f32.mrf.mxu0
        %795 = vdwg.mxu0
        %v796 = vsel %vm365, %v793, -inf
        %797 = vmax.xlane.f32.xlu0 %v796
        %v798 = vpop.xlane.xlu0 %797
        %v799 = vsub.f32 %v793, %v798
        %v800 = vmul.f32 %v799, 1.442695
        %v801 = vpow.pop %v800
        %v802 = vsel %vm365, %v801, 0.0
        %803 = vadd.xlane.f32.xlu0 %v802
        %v804 = vpop.xlane.xlu0 %803
        %v805 = vrcp.pop %v804
        %v806 = vpack.c.bf16 %v801, %v801
        %807 = vrot.lane.b32.xlu0 %v744, 64
        %v808 = vpop.permute.xlu0 %807
        %v810 = vsel %vm365, %v806, 0
        %v813 = vsel %vm380, %v808, 0
        %815 = vmatpush.bf16.msra.mxu0 0
        %816 = vmatpush.bf16.msra.mxu0 0
        %817 = vmatpush.bf16.msra.mxu0 0
        %818 = vmatpush.bf16.msra.mxu0 0
        %819 = vmatpush.bf16.msra.mxu0 0
        %820 = vmatpush.bf16.msra.mxu0 0
        %821 = vmatpush.bf16.msra.mxu0 0
        %822 = vmatpush.bf16.msra.mxu0 %v813
        %823 = vmatmul.bf16.gmra.mxu0 %v810
        %v824 = vpop.f32.mrf.mxu0
        %v825 = vadd.f32 0.0, %v824
        %v826 = vpop.f32.mrf.mxu0
        %827 = vdwg.mxu0
        %v828 = vmul.f32 %v805, %v620
        %830 = vset.pattern.permute.xlu0 0
        %831 = vperm.xlu0 %830, %v828
        %v832 = vpop.permute.xlu0 %831
        %v834 = vmul.f32 %v825, %v832
        %835 = vrot.lane.b32.xlu0 %v704, 32
        %v836 = vpop.permute.xlu0 %835
        %837 = vrot.lane.b32.xlu0 %v709, 32
        %v838 = vpop.permute.xlu0 %837
        %v840 = vsel %vm345, %v836, 0
        %v843 = vsel %vm345, %v838, 0
        %845 = vmatpush.bf16.xpose.msra.mxu0 0
        %846 = vmatpush.bf16.xpose.msra.mxu0 0
        %847 = vmatpush.bf16.xpose.msra.mxu0 0
        %848 = vmatpush.bf16.xpose.msra.mxu0 0
        %849 = vmatpush.bf16.xpose.msra.mxu0 0
        %850 = vmatpush.bf16.xpose.msra.mxu0 0
        %851 = vmatpush.bf16.xpose.msra.mxu0 0
        %852 = vmatpush.bf16.xpose.msra.mxu0 %v843
        %853 = vmatmul.bf16.gmra.mxu0 %v840
        %v854 = vpop.f32.mrf.mxu0
        %v855 = vadd.f32 0.0, %v854
        %v856 = vpop.f32.mrf.mxu0
        %857 = vdwg.mxu0
        %v858 = vsel %vm365, %v855, -inf
        %859 = vmax.xlane.f32.xlu0 %v858
        %v860 = vpop.xlane.xlu0 %859
        %v861 = vsub.f32 %v855, %v860
        %v862 = vmul.f32 %v861, 1.442695
        %v863 = vpow.pop %v862
        %v864 = vsel %vm365, %v863, 0.0
        %865 = vadd.xlane.f32.xlu0 %v864
        %v866 = vpop.xlane.xlu0 %865
        %v867 = vrcp.pop %v866
        %v868 = vpack.c.bf16 %v863, %v863
        %869 = vrot.lane.b32.xlu0 %v744, 32
        %v870 = vpop.permute.xlu0 %869
        %v872 = vsel %vm365, %v868, 0
        %v875 = vsel %vm380, %v870, 0
        %877 = vmatpush.bf16.msra.mxu0 0
        %878 = vmatpush.bf16.msra.mxu0 0
        %879 = vmatpush.bf16.msra.mxu0 0
        %880 = vmatpush.bf16.msra.mxu0 0
        %881 = vmatpush.bf16.msra.mxu0 0
        %882 = vmatpush.bf16.msra.mxu0 0
        %883 = vmatpush.bf16.msra.mxu0 0
        %884 = vmatpush.bf16.msra.mxu0 %v875
        %885 = vmatmul.bf16.gmra.mxu0 %v872
        %v886 = vpop.f32.mrf.mxu0
        %v887 = vadd.f32 0.0, %v886
        %v888 = vpop.f32.mrf.mxu0
        %889 = vdwg.mxu0
        %v890 = vmul.f32 %v867, %v620
        %892 = vset.pattern.permute.xlu0 0
        %893 = vperm.xlu0 %892, %v890
        %v894 = vpop.permute.xlu0 %893
        %v896 = vmul.f32 %v887, %v894
        %898 = vrot.lane.b32.xlu0 %v772, 32
        %v899 = vpop.permute.xlu0 %898
        %902 = vrot.lane.b32.xlu0 %v834, 64
        %v903 = vpop.permute.xlu0 %902
        %906 = vrot.lane.b32.xlu0 %v896, 96
        %v907 = vpop.permute.xlu0 %906
        %v909 = vsel %vm345, %v701, %v899
        %v910 = vsel %vm612, %v909, %v903
        %v911 = vsel %vm614, %v910, %v907
        %v912 = vld [vmem:[#allocation3] sm:$0xff]
        %v913 = vadd.f32 %v912, %v911
        %914 = vst [vmem:[#allocation3] sm:$0xff] %v913
        %v915 = vld [vmem:[#allocation3] sm:$0xff]
        %916 = vst [vmem:[%s312] sm:$0xff] %v915
        %s917 = sand.u32 %s151, 1
        %s918 = scalar_lea.sflag [#allocation9], %s917
        %s919 = sand.u32 %s151, 1
        %s920 = smul.addr %s919, 8
        %s921 = scalar_lea.vmem [#allocation13], %s920
        // Predicated region
        $region49: #{tpu_custom_call.1} parent=35 // pred_check
          %p922 = pneg %p161
        $region50: #{tpu_custom_call.1} parent=35 // pred_check_branch
          %924 = sbr.rel (%p922) target = $region52
        $region51: #{tpu_custom_call.1} parent=35 // pred_region
          %926 = vsyncadd %s918, 0
          %s927 = sadd.s32 %s29, %s28
          %s928 = smul.addr %s927, 8
          %s929 = scalar_lea.hbm %s4, %s928
          %s931 = sshll.u32 %s921, 4
          %s932 = int_to_ptr.vmem [resolvable:$true] %s931
          %s933 = sshll.u32 %s929, 4
          %s934 = int_to_ptr.hbm [resolvable:$true] %s933
          %936 = dma.vmem_to_hbm [thread:$0]  %s932, 128, %s934, %s918
        $region52: #{tpu_custom_call.1} parent=35 // pred_fallthru
          _
      $region36: #{tpu_custom_call.1} parent=5 // pred_fallthru
        _
      %p937 = scmp.le.s32.totalorder 2, %s19
      // Predicated region
      $region53: #{tpu_custom_call.1} parent=5 // pred_check
        %p938 = pneg %p937
      $region54: #{tpu_custom_call.1} parent=5 // pred_check_branch
        %940 = sbr.rel (%p938) target = $region56
      $region55: #{tpu_custom_call.1} parent=5 // pred_region
        %s941 = ssub.s32 %s19, 2
        // Predicated region
        $region57: #{tpu_custom_call.1} parent=55 // pred_check
          %p942 = pneg %p167
        $region58: #{tpu_custom_call.1} parent=55 // pred_check_branch
          %944 = sbr.rel (%p942) target = $region60
        $region59: #{tpu_custom_call.1} parent=55 // pred_region
          %s945 = sand.u32 %s152, 1
          %s946 = scalar_lea.sflag [#allocation9], %s945
          %s947 = sand.u32 %s152, 1
          %s948 = smul.addr %s947, 8
          %s949 = scalar_lea.vmem [#allocation13], %s948
          %951 = dma.done %s946, 128
        $region60: #{tpu_custom_call.1} parent=55 // pred_fallthru
          _
      $region56: #{tpu_custom_call.1} parent=5 // pred_fallthru
        _
    $region6: #{tpu_custom_call.1} parent=1 // loop_footer
      %s23 = sadd.s32 1, %s19
    $region7: #{tpu_custom_call.1} parent=1 // loop_footer_branch
      %18 = sbr.rel target = $region3
    $region8: #{tpu_custom_call.1} parent=1 // loop_exit
      _
    %952 = vsyncpa [#allocation8], 1
    %s953 = scalar_lea.sflag [#allocation8], 1
    %954 = vsyncpa %s953, 1
    %955 = vsyncpa [#allocation11], 1
    %s956 = scalar_lea.sflag [#allocation11], 1
    %957 = vsyncpa %s956, 1
    %958 = vsyncpa [#allocation9], 1
    %s959 = scalar_lea.sflag [#allocation9], 1
    %960 = vsyncpa %s959, 1

</llo_original>
